<compile_context>
chip_gen: v7x
topology: tpu7x:2x2x1
jax: 0.10.0
libtpu: 0.0.40
codegen_flags: <defaults>
</compile_context>

<pallas_src>
import functools
import math

import jax
import jax.numpy as jnp
from jax.experimental import pallas as pl
from jax.experimental.pallas import tpu as pltpu

LANES = 128


# ----------------------------------------------------------------------------
# Tiling / layout helpers
# ----------------------------------------------------------------------------
def _cdiv(a, b):
    return -(-a // b)


def _round_up(a, b):
    return _cdiv(a, b) * b


def _plan_tiling(n, tile_rows, min_tiles=2):
    """Plan a lane-dense (rows, 128) layout.

    Returns (padded_rows, tile_r) with tile_r % 8 == 0, tile_r * num_tiles ==
    padded_rows, and padded_rows only marginally larger than ceil(n/128)
    rounded to 8 (no rounding up to a whole fixed-size tile).  Ensures at
    least `min_tiles` row tiles when possible so v7x's 2 TCs both get work.
    """
    rows = max(_round_up(_cdiv(n, LANES), 8), 8)
    tile_rows = max(int(tile_rows), 8)
    num_tiles = _cdiv(rows, _round_up(tile_rows, 8))
    if rows >= 16:
        num_tiles = max(num_tiles, min_tiles)
    num_tiles = min(num_tiles, rows // 8)           # keep tile_r >= 8
    tile_r = _round_up(_cdiv(rows, num_tiles), 8)
    rows = tile_r * num_tiles
    return rows, tile_r


def _pad_flatten(a, padded, leading=()):
    """Flatten (after `leading` dims) to lane-dense (rows, 128), zero-padded.

    Keeps the input dtype (no f32 upcast here -- done in-kernel)."""
    a = a.reshape(leading + (-1,))
    n = a.shape[-1]
    if padded != n:
        pad = [(0, 0)] * len(leading) + [(0, padded - n)]
        a = jnp.pad(a, pad)
    return a.reshape(leading + (padded // LANES, LANES))


def _unpad(a, n, target_shape):
    """Slice a padded (..., rows, 128) slab back to `target_shape`."""
    lead = a.shape[:-2]
    a = a.reshape(lead + (-1,))
    if a.shape[-1] != n:
        a = a[..., :n]
    return a.reshape(target_shape)


def _vmem_limit(per_step_bytes):
    """Explicit scoped-VMEM budget: double-buffered blocks + headroom,
    clamped to [32 MiB, 56 MiB] (fits v5e/v6e/v7x physical VMEM)."""
    est = 2 * per_step_bytes + (4 << 20)
    return int(min(max(est, 32 << 20), 56 << 20))


def _pick_time_block(T, requested):
    """Largest divisor of T that is <= requested."""
    tb = min(max(int(requested), 1), T)
    while T % tb:
        tb -= 1
    return tb


# ----------------------------------------------------------------------------
# Single-timestep kernel
# ----------------------------------------------------------------------------
def _make_step_kernel(tau, v_threshold, v_reset):
    inv_tau = 1.0 / float(tau)

    def kernel(v_ref, x_ref, v_out_ref, spike_ref):
        v = v_ref[...]                              # f32 state
        x = x_ref[...].astype(jnp.float32)          # x may be bf16; upcast on VPU
        v_new = v + inv_tau * (x - v)               # leaky integrate
        fired = v_new >= v_threshold                # fire
        spike_ref[...] = fired.astype(spike_ref.dtype)
        v_out_ref[...] = jnp.where(fired, jnp.float32(v_reset), v_new)  # reset

    return kernel


def _step_call(v2d, x2d, tile_r, tau, v_threshold, v_reset, spike_dtype):
    """pallas_call on pre-padded (rows, 128) arrays; v2d must be f32."""
    rows = v2d.shape[0]
    spec = pl.BlockSpec((tile_r, LANES), lambda i: (i, 0))
    per_step = tile_r * LANES * (
        4 + x2d.dtype.itemsize + 4 + jnp.dtype(spike_dtype).itemsize)
    return pl.pallas_call(
        _make_step_kernel(tau, v_threshold, v_reset),
        out_shape=(
            jax.ShapeDtypeStruct((rows, LANES), jnp.float32),
            jax.ShapeDtypeStruct((rows, LANES), spike_dtype),
        ),
        grid=(rows // tile_r,),
        in_specs=[spec, spec],
        out_specs=(spec, spec),
        input_output_aliases={0: 0},                 # v_new reuses v's HBM buffer
        compiler_params=pltpu.CompilerParams(
            dimension_semantics=("parallel",),
            vmem_limit_bytes=_vmem_limit(per_step)),
    )(v2d, x2d)


@functools.partial(
    jax.jit,
    static_argnames=("tau", "v_threshold", "v_reset", "tile_rows", "spike_dtype"))
def lif_forward(v, x, *, tau=2.0, v_threshold=1.0, v_reset=0.0,
                tile_rows=4096, spike_dtype=jnp.float32):
    """One LIF step (stateless convenience API). v, x: same shape."""
    assert v.shape == x.shape
    orig_shape = x.shape
    n = x.size
    rows, tile_r = _plan_tiling(n, tile_rows)
    padded = rows * LANES

    v2d = _pad_flatten(v.astype(jnp.float32), padded)
    x2d = _pad_flatten(x, padded)
    v_new, spike = _step_call(v2d, x2d, tile_r, tau, v_threshold, v_reset,
                              spike_dtype)
    return _unpad(v_new, n, orig_shape), _unpad(spike, n, orig_shape)


# Stateful step on a persistent pre-padded state.  v2d (arg 0) is donated so
# the kernel's input_output_aliases={0:0} hits the caller's HBM buffer.
@functools.partial(
    jax.jit,
    static_argnames=("tile_r", "tau", "v_threshold", "v_reset", "spike_dtype",
                     "n", "orig_shape"),
    donate_argnums=(0,))
def _lif_step_stateful(v2d, x, *, tile_r, tau, v_threshold, v_reset,
                       spike_dtype, n, orig_shape):
    padded = v2d.shape[0] * LANES
    x2d = _pad_flatten(x, padded)
    v2d_new, spike2d = _step_call(v2d, x2d, tile_r, tau, v_threshold, v_reset,
                                  spike_dtype)
    return v2d_new, _unpad(v2d_new, n, orig_shape), _unpad(spike2d, n, orig_shape)


# ----------------------------------------------------------------------------
# Fused time-loop kernel: v stays VMEM-resident across T for each row tile;
# each grid step processes `time_block` timesteps (fatter DMAs, fewer steps).
# ----------------------------------------------------------------------------
def _make_seq_kernel(tau, v_threshold, v_reset, time_block):
    inv_tau = 1.0 / float(tau)

    def kernel(v_in_ref, x_ref, v_out_ref, spike_ref):
        # v_out's block index is independent of the time axis, so it is the
        # VMEM-resident carry for this row tile: initialize from v_in on the
        # first time block, write back to HBM only when the tile changes.
        @pl.when(pl.program_id(1) == 0)
        def _init():
            v_out_ref[...] = v_in_ref[...]

        v = v_out_ref[...]
        for t in range(time_block):                  # static unrolled
            x = x_ref[t].astype(jnp.float32)
            v_new = v + inv_tau * (x - v)
            fired = v_new >= v_threshold
            spike_ref[t] = fired.astype(spike_ref.dtype)
            v = jnp.where(fired, jnp.float32(v_reset), v_new)
        v_out_ref[...] = v

    return kernel


def _seq_call(v2d, x3d, tile_r, time_block, tau, v_threshold, v_reset,
              spike_dtype):
    rows = v2d.shape[0]
    T = x3d.shape[0]
    v_spec = pl.BlockSpec((tile_r, LANES), lambda i, t: (i, 0))
    x_spec = pl.BlockSpec((time_block, tile_r, LANES), lambda i, t: (t, i, 0))
    s_spec = pl.BlockSpec((time_block, tile_r, LANES), lambda i, t: (t, i, 0))
    per_step = tile_r * LANES * (
        4 + 4 + time_block * (x3d.dtype.itemsize + jnp.dtype(spike_dtype).itemsize))
    return pl.pallas_call(
        _make_seq_kernel(tau, v_threshold, v_reset, time_block),
        out_shape=(
            jax.ShapeDtypeStruct((rows, LANES), jnp.float32),
            jax.ShapeDtypeStruct((T, rows, LANES), spike_dtype),
        ),
        grid=(rows // tile_r, T // time_block),
        in_specs=[v_spec, x_spec],
        out_specs=(v_spec, s_spec),
        input_output_aliases={0: 0},
        compiler_params=pltpu.CompilerParams(
            dimension_semantics=("parallel", "arbitrary"),
            vmem_limit_bytes=_vmem_limit(per_step)),
    )(v2d, x3d)


@functools.partial(
    jax.jit,
    static_argnames=("tau", "v_threshold", "v_reset", "tile_rows",
                     "time_block", "spike_dtype"))
def lif_forward_sequence(v, x_seq, *, tau=2.0, v_threshold=1.0, v_reset=0.0,
                         tile_rows=2048, time_block=4,
                         spike_dtype=jnp.bfloat16):
    """Run T LIF steps fused in one kernel. x_seq: (T, *v.shape).

    Returns (v_final, spikes) with spikes shaped (T, *v.shape).  Spikes
    default to bf16 ({0,1} exact, halves writeback bytes); pass
    spike_dtype=jnp.float32 for strict PyTorch parity."""
    T = x_seq.shape[0]
    state_shape = x_seq.shape[1:]
    assert v.shape == state_shape
    n = v.size
    rows, tile_r = _plan_tiling(n, tile_rows)
    padded = rows * LANES
    tb = _pick_time_block(T, time_block)

    v2d = _pad_flatten(v.astype(jnp.float32), padded)
    x3d = _pad_flatten(x_seq, padded, leading=(T,))

    v_new, spikes = _seq_call(v2d, x3d, tile_r, tb, tau, v_threshold, v_reset,
                              spike_dtype)
    return (_unpad(v_new, n, state_shape),
            _unpad(spikes, n, (T,) + state_shape))


# ----------------------------------------------------------------------------
# Stateful wrapper matching the PyTorch module's interface.
# Membrane state is stored persistently in the padded kernel layout (f32),
# so per-step calls never pad/cast/slice v and the donated buffer is updated
# in place through input_output_aliases.
# ----------------------------------------------------------------------------
class LIFNeuronPallas:
    def __init__(self, input_size, tau=2.0, v_threshold=1.0, v_reset=0.0,
                 tile_rows=4096, spike_dtype=jnp.float32):
        if isinstance(input_size, int):
            input_size = (input_size,)
        self.input_size = tuple(input_size)
        self.tau = float(tau)
        self.v_threshold = float(v_threshold)
        self.v_reset = float(v_reset)
        self.spike_dtype = spike_dtype
        self._n = math.prod(self.input_size) if self.input_size else 1
        self._rows, self._tile_r = _plan_tiling(self._n, tile_rows)
        # Persistent pre-padded lane-dense state.
        self._v = jnp.zeros((self._rows, LANES), dtype=jnp.float32)

    @property
    def v(self):
        return _unpad(self._v, self._n, self.input_size)

    def reset(self):
        self._v = jnp.zeros_like(self._v)

    def __call__(self, x):
        self._v, v_user, spike = _lif_step_stateful(
            self._v, x,
            tile_r=self._tile_r, tau=self.tau, v_threshold=self.v_threshold,
            v_reset=self.v_reset, spike_dtype=self.spike_dtype,
            n=self._n, orig_shape=self.input_size)
        return v_user, spike

    def forward_sequence(self, x_seq, *, time_block=4):
        # f32 spikes here for PyTorch parity; pad/slice of v amortizes over T.
        v_new, spikes = lif_forward_sequence(
            self.v, x_seq, tau=self.tau, v_threshold=self.v_threshold,
            v_reset=self.v_reset, time_block=time_block,
            spike_dtype=jnp.float32)
        self._v = _pad_flatten(v_new, self._rows * LANES)
        return v_new, spikes


if __name__ == "__main__":
    B, C, H, W = 2, 4, 16, 16
    T = 8
    key = jax.random.PRNGKey(0)
    k1, k2 = jax.random.split(key)
    x = jax.random.normal(k1, (B, C, H, W), dtype=jnp.float32) * 2.0
    x_seq = jax.random.normal(k2, (T, B, C, H, W), dtype=jnp.float32) * 2.0

    def ref_step(v, xi, tau=2.0, v_threshold=1.0, v_reset=0.0):
        v = v + (1.0 / tau) * (-v + xi)
        s = (v >= v_threshold).astype(jnp.float32)
        v = jnp.where(s == 1.0, v_reset, v)
        return v, s

    # --- stateful per-step wrapper (persistent padded + donated state) ---
    neuron = LIFNeuronPallas((B, C, H, W), tau=2.0, v_threshold=1.0, v_reset=0.0)
    v_out, spike = neuron(x)
    jax.block_until_ready((v_out, spike))
    v_ref, s_ref = ref_step(jnp.zeros((B, C, H, W), jnp.float32), x)
    assert jnp.allclose(v_out, v_ref, atol=1e-6), "step-1 v mismatch"
    assert jnp.array_equal(spike, s_ref), "step-1 spike mismatch"

    x2 = x * 0.5
    v_out2, spike2 = neuron(x2)
    jax.block_until_ready((v_out2, spike2))
    v_ref2, s_ref2 = ref_step(v_ref, x2)
    assert jnp.allclose(v_out2, v_ref2, atol=1e-6), "step-2 v mismatch"
    assert jnp.array_equal(spike2, s_ref2), "step-2 spike mismatch"

    # --- stateless single-step kernel ---
    v_a, s_a = lif_forward(jnp.zeros((B, C, H, W), jnp.float32), x)
    jax.block_until_ready((v_a, s_a))
    assert jnp.allclose(v_a, v_ref, atol=1e-6), "single-step v mismatch"
    assert jnp.array_equal(s_a, s_ref), "single-step spike mismatch"

    # --- fused time-loop kernel vs. looped reference (bf16 spikes, {0,1}) ---
    v0 = jnp.zeros((B, C, H, W), jnp.float32)
    v_seq, spikes = lif_forward_sequence(v0, x_seq)
    jax.block_until_ready((v_seq, spikes))

    v_r = v0
    s_list = []
    for t in range(T):
        v_r, s_t = ref_step(v_r, x_seq[t])
        s_list.append(s_t)
    s_r = jnp.stack(s_list)
    assert jnp.allclose(v_seq, v_r, atol=1e-6), "sequence v mismatch"
    assert jnp.array_equal(spikes.astype(jnp.float32), s_r), "sequence spike mismatch"

    print("KERNEL_OK")
</pallas_src>

<mosaic_0001>
module attributes {stable_mosaic.version = 11 : i64} {
  func.func @kernel(%arg0: i32, %arg1: memref<8x128xf32, #tpu.memory_space<vmem>>, %arg2: memref<8x128xf32, #tpu.memory_space<vmem>>, %arg3: memref<8x128xf32, #tpu.memory_space<vmem>>, %arg4: memref<8x128xf32, #tpu.memory_space<vmem>>) attributes {dimension_semantics = [#tpu.dimension_semantics<parallel>], iteration_bounds = array<i64: 2>, scalar_prefetch = 0 : i64, scratch_operands = 0 : i64, tpu.core_type = #tpu.core_type<tc>, window_params = [{transform_indices = @transform_0, window_bounds = array<i64: 8, 128>}, {transform_indices = @transform_1, window_bounds = array<i64: 8, 128>}, {transform_indices = @transform_2, window_bounds = array<i64: 8, 128>}, {transform_indices = @transform_3, window_bounds = array<i64: 8, 128>}]} {
    %c0 = arith.constant 0 : index
    %c0_0 = arith.constant 0 : index
    %0 = vector.load %arg1[%c0, %c0_0] : memref<8x128xf32, #tpu.memory_space<vmem>>, vector<8x128xf32>
    %c0_1 = arith.constant 0 : index
    %c0_2 = arith.constant 0 : index
    %1 = vector.load %arg2[%c0_1, %c0_2] : memref<8x128xf32, #tpu.memory_space<vmem>>, vector<8x128xf32>
    %2 = arith.subf %1, %0 : vector<8x128xf32>
    %cst = arith.constant 5.000000e-01 : f32
    %3 = vector.broadcast %cst : f32 to vector<8x128xf32>
    %4 = arith.mulf %3, %2 : vector<8x128xf32>
    %5 = arith.addf %0, %4 : vector<8x128xf32>
    %cst_3 = arith.constant 1.000000e+00 : f32
    %6 = vector.broadcast %cst_3 : f32 to vector<8x128xf32>
    %7 = arith.cmpf oge, %5, %6 : vector<8x128xf32>
    %8 = arith.extui %7 : vector<8x128xi1> to vector<8x128xi32>
    %9 = arith.sitofp %8 : vector<8x128xi32> to vector<8x128xf32>
    %c0_4 = arith.constant 0 : index
    %c0_5 = arith.constant 0 : index
    %10 = vector.load %arg4[%c0_4, %c0_5] : memref<8x128xf32, #tpu.memory_space<vmem>>, vector<8x128xf32>
    tpu.vector_store %arg4[%c0_4, %c0_5], %9 {strides = array<i32>} : memref<8x128xf32, #tpu.memory_space<vmem>>, vector<8x128xf32>,
    %cst_6 = arith.constant 0.000000e+00 : f32
    %11 = vector.broadcast %cst_6 : f32 to vector<8x128xf32>
    %12 = arith.select %7, %11, %5 : vector<8x128xi1>, vector<8x128xf32>
    %c0_7 = arith.constant 0 : index
    %c0_8 = arith.constant 0 : index
    %13 = vector.load %arg3[%c0_7, %c0_8] : memref<8x128xf32, #tpu.memory_space<vmem>>, vector<8x128xf32>
    tpu.vector_store %arg3[%c0_7, %c0_8], %12 {strides = array<i32>} : memref<8x128xf32, #tpu.memory_space<vmem>>, vector<8x128xf32>,
    return
  }
  func.func @transform_0(%arg0: i32) -> (i32, i32) {
    %c0_i32 = arith.constant 0 : i32
    %c0_i32_0 = arith.constant 0 : i32
    return %arg0, %c0_i32 : i32, i32
  }
  func.func @transform_1(%arg0: i32) -> (i32, i32) {
    %c0_i32 = arith.constant 0 : i32
    %c0_i32_0 = arith.constant 0 : i32
    return %arg0, %c0_i32 : i32, i32
  }
  func.func @transform_2(%arg0: i32) -> (i32, i32) {
    %c0_i32 = arith.constant 0 : i32
    %c0_i32_0 = arith.constant 0 : i32
    return %arg0, %c0_i32 : i32, i32
  }
  func.func @transform_3(%arg0: i32) -> (i32, i32) {
    %c0_i32 = arith.constant 0 : i32
    %c0_i32_0 = arith.constant 0 : i32
    return %arg0, %c0_i32 : i32, i32
  }
}

</mosaic_0001>

<llo_original>
// kernel: _lif_step_stateful.1
$region0: #{_lif_step_stateful.1}
  #allocation0 [shape = 'u32[]', space=smem, size = 0x4, offset = 0x4, fixed_abs, tag = 'smem constant byte address 0x4 - core index']
  #allocation1 [shape = 'u32[144,128]{1,0:T(1,128)}', space=vmem, size = 0x12000, scoped, tag = 'internal scratch']
  %s0 = inlined_call_operand.vmem [shape: f32[16,128], index: 0, kind: input, shape index: {}, may-alias: {0,2}]
  %s1 = inlined_call_operand.vmem [shape: f32[16,128], index: 1, kind: input, shape index: {}]
  %s2 = inlined_call_operand.vmem [shape: f32[16,128], index: 2, kind: output, shape index: {0}, may-alias: {0,2}]
  %s3 = inlined_call_operand.vmem [shape: f32[16,128], index: 3, kind: output, shape index: {1}]
  %4 = xla_tuple %s2, %s3
  %s5 = sld [smem:[#allocation0]]
  $region49: #{_lif_step_stateful.1} parent=0
    _
  %s7 = ssub.s32 1, %s5
  %s8 = scalar_select 0, %s7, %s5
  loop: start=0, step=1, limit=4
  $region2: #{_lif_step_stateful.1} parent=0 // loop_pre_header
    _
  $region3: #{_lif_step_stateful.1} parent=0 // loop_header
    %s10 = sphi 0, %s14
    %p11 = scmp.ge.s32.totalorder %s10, 4
    %s20 = sphi 0, %s22
    %s23 = sphi 0, %s20
    %s24 = sphi 0, %s23
    %s40 = sphi 0, %s24
    %s46 = sphi 0, %s48
    %s49 = sphi 0, %s46
    %s50 = sphi 0, %s49
    %s66 = sphi 0, %s50
    %s72 = sphi 0, %s74
    %s75 = sphi 0, %s72
    %s76 = sphi 0, %s75
    %s92 = sphi 0, %s76
    %s98 = sphi 0, %s100
    %s101 = sphi 0, %s98
    %s102 = sphi 0, %s101
    %s118 = sphi 0, %s102
  $region4: #{_lif_step_stateful.1} parent=0 // loop_header_branch
    %13 = sbr.rel (%p11) target = $region8
  $region5: #{_lif_step_stateful.1} parent=0 // loop_body
    %s15 = ssub.s32 %s10, 1
    %s16 = ssub.s32 %s10, 2
    %s17 = sadd.s32 %s10, 1
    %s18 = ssub.s32 %s10, %s17
    %p19 = scmp.eq.s32.totalorder %s18, 0
    %s21 = sadd.s32 %s20, 1
    %s22 = scalar_select %p19, %s20, %s21
    %p25 = pneg %p19
    %p26 = scmp.eq.s32.totalorder %s10, 1
    %p27 = por %p25, %p26
    %p28 = scmp.ne.s32.totalorder %s20, %s23
    %p29 = scmp.eq.s32.totalorder %s10, 0
    %p30 = por %p28, %p29
    %p31 = scmp.ne.s32.totalorder %s20, %s23
    %p32 = scmp.eq.s32.totalorder %s15, 1
    %p33 = por %p31, %p32
    %p34 = scmp.ne.s32.totalorder %s23, %s24
    %p35 = scmp.eq.s32.totalorder %s15, 0
    %p36 = por %p34, %p35
    %p37 = scmp.ne.s32.totalorder %s23, %s24
    %p38 = scmp.eq.s32.totalorder %s16, 1
    %p39 = por %p37, %p38
    %p41 = scmp.ne.s32.totalorder %s24, %s40
    %p42 = scmp.eq.s32.totalorder %s16, 0
    %p43 = por %p41, %p42
    %s44 = ssub.s32 %s10, %s17
    %p45 = scmp.eq.s32.totalorder %s44, 0
    %s47 = sadd.s32 %s46, 1
    %s48 = scalar_select %p45, %s46, %s47
    %p51 = pneg %p45
    %p52 = scmp.eq.s32.totalorder %s10, 1
    %p53 = por %p51, %p52
    %p54 = scmp.ne.s32.totalorder %s46, %s49
    %p55 = scmp.eq.s32.totalorder %s10, 0
    %p56 = por %p54, %p55
    %p57 = scmp.ne.s32.totalorder %s46, %s49
    %p58 = scmp.eq.s32.totalorder %s15, 1
    %p59 = por %p57, %p58
    %p60 = scmp.ne.s32.totalorder %s49, %s50
    %p61 = scmp.eq.s32.totalorder %s15, 0
    %p62 = por %p60, %p61
    %p63 = scmp.ne.s32.totalorder %s49, %s50
    %p64 = scmp.eq.s32.totalorder %s16, 1
    %p65 = por %p63, %p64
    %p67 = scmp.ne.s32.totalorder %s50, %s66
    %p68 = scmp.eq.s32.totalorder %s16, 0
    %p69 = por %p67, %p68
    %s70 = ssub.s32 %s10, %s17
    %p71 = scmp.eq.s32.totalorder %s70, 0
    %s73 = sadd.s32 %s72, 1
    %s74 = scalar_select %p71, %s72, %s73
    %p77 = pneg %p71
    %p78 = scmp.eq.s32.totalorder %s10, 1
    %p79 = por %p77, %p78
    %p80 = scmp.ne.s32.totalorder %s72, %s75
    %p81 = scmp.eq.s32.totalorder %s10, 0
    %p82 = por %p80, %p81
    %p83 = scmp.ne.s32.totalorder %s72, %s75
    %p84 = scmp.eq.s32.totalorder %s15, 1
    %p85 = por %p83, %p84
    %p86 = scmp.ne.s32.totalorder %s75, %s76
    %p87 = scmp.eq.s32.totalorder %s15, 0
    %p88 = por %p86, %p87
    %p89 = scmp.ne.s32.totalorder %s75, %s76
    %p90 = scmp.eq.s32.totalorder %s16, 1
    %p91 = por %p89, %p90
    %p93 = scmp.ne.s32.totalorder %s76, %s92
    %p94 = scmp.eq.s32.totalorder %s16, 0
    %p95 = por %p93, %p94
    %s96 = ssub.s32 %s10, %s17
    %p97 = scmp.eq.s32.totalorder %s96, 0
    %s99 = sadd.s32 %s98, 1
    %s100 = scalar_select %p97, %s98, %s99
    %p103 = pneg %p97
    %p104 = scmp.eq.s32.totalorder %s10, 1
    %p105 = por %p103, %p104
    %p106 = scmp.ne.s32.totalorder %s98, %s101
    %p107 = scmp.eq.s32.totalorder %s10, 0
    %p108 = por %p106, %p107
    %p109 = scmp.ne.s32.totalorder %s98, %s101
    %p110 = scmp.eq.s32.totalorder %s15, 1
    %p111 = por %p109, %p110
    %p112 = scmp.ne.s32.totalorder %s101, %s102
    %p113 = scmp.eq.s32.totalorder %s15, 0
    %p114 = por %p112, %p113
    %p115 = scmp.ne.s32.totalorder %s101, %s102
    %p116 = scmp.eq.s32.totalorder %s16, 1
    %p117 = por %p115, %p116
    %p119 = scmp.ne.s32.totalorder %s102, %s118
    %p120 = scmp.eq.s32.totalorder %s16, 0
    %p121 = por %p119, %p120
    %p122 = scmp.le.s32.totalorder 1, %s10
    %p123 = scmp.lt.s32.totalorder %s10, 3
    %p124 = pnand %p122, %p123
    %p125 = pneg %p124
    // Predicated region
    $region9: #{_lif_step_stateful.1} parent=5 // pred_check
      _
    $region10: #{_lif_step_stateful.1} parent=5 // pred_check_branch
      %127 = sbr.rel (%p124) target = $region12
    $region11: #{_lif_step_stateful.1} parent=5 // pred_region
      %s128 = ssub.s32 %s10, 1
    $region12: #{_lif_step_stateful.1} parent=5 // pred_fallthru
      _
    %p129 = scmp.lt.s32.totalorder %s10, 2
    // Predicated region
    $region13: #{_lif_step_stateful.1} parent=5 // pred_check
      %p130 = pneg %p129
    $region14: #{_lif_step_stateful.1} parent=5 // pred_check_branch
      %132 = sbr.rel (%p130) target = $region16
    $region15: #{_lif_step_stateful.1} parent=5 // pred_region
      // Predicated region
      $region17: #{_lif_step_stateful.1} parent=15 // pred_check
        %p133 = pneg %p30
      $region18: #{_lif_step_stateful.1} parent=15 // pred_check_branch
        %135 = sbr.rel (%p133) target = $region20
      $region19: #{_lif_step_stateful.1} parent=15 // pred_region
        %p136 = scmp.lt.s32.totalorder %s10, 1
        %s137 = scalar_select %p136, %s10, 1
        %s138 = smul.addr %s137, 8
        %s139 = scalar_lea.vmem %s0, %s138
      $region20: #{_lif_step_stateful.1} parent=15 // pred_fallthru
        _
      // Predicated region
      $region21: #{_lif_step_stateful.1} parent=15 // pred_check
        %p140 = pneg %p56
      $region22: #{_lif_step_stateful.1} parent=15 // pred_check_branch
        %142 = sbr.rel (%p140) target = $region24
      $region23: #{_lif_step_stateful.1} parent=15 // pred_region
        %p143 = scmp.lt.s32.totalorder %s10, 1
        %s144 = scalar_select %p143, %s10, 1
        %s145 = smul.addr %s144, 8
        %s146 = scalar_lea.vmem %s1, %s145
      $region24: #{_lif_step_stateful.1} parent=15 // pred_fallthru
        _
    $region16: #{_lif_step_stateful.1} parent=5 // pred_fallthru
      _
    %p147 = scmp.le.s32.totalorder 1, %s10
    %p148 = scmp.lt.s32.totalorder %s10, 3
    %p149 = pnand %p147, %p148
    %p150 = pneg %p149
    // Predicated region
    $region25: #{_lif_step_stateful.1} parent=5 // pred_check
      _
    $region26: #{_lif_step_stateful.1} parent=5 // pred_check_branch
      %152 = sbr.rel (%p149) target = $region28
    $region27: #{_lif_step_stateful.1} parent=5 // pred_region
      %s153 = ssub.s32 %s10, 1
      %p154 = scmp.lt.s32.totalorder %s15, 1
      %s155 = scalar_select %p154, %s15, 1
      %s156 = smul.addr %s155, 8
      %s157 = scalar_lea.vmem %s0, %s156
      %p158 = pneg %p36
      %p159 = pneg %p33
      %p160 = scmp.lt.s32.totalorder %s15, 1
      %s161 = scalar_select %p160, %s15, 1
      %s162 = smul.addr %s161, 8
      %s163 = scalar_lea.vmem %s1, %s162
      %p164 = pneg %p62
      %p165 = pneg %p59
      %p166 = pneg %p88
      %p167 = pneg %p85
      %p168 = scmp.lt.s32.totalorder %s15, 1
      %s169 = scalar_select %p168, %s15, 1
      %s170 = smul.addr %s169, 8
      %s171 = scalar_lea.vmem %s2, %s170
      %p172 = pneg %p114
      %p173 = pneg %p111
      %p174 = scmp.lt.s32.totalorder %s15, 1
      %s175 = scalar_select %p174, %s15, 1
      %s176 = smul.addr %s175, 8
      %s177 = scalar_lea.vmem %s3, %s176
      %p178 = scmp.lt.s32.totalorder %s15, 1
      %s179 = scalar_select %p178, %s15, 1
      %s180 = smul.addr %s179, 8
      %s181 = scalar_lea.vmem %s0, %s180
      %p182 = scmp.lt.s32.totalorder %s15, 1
      %s183 = scalar_select %p182, %s15, 1
      %s184 = smul.addr %s183, 8
      %s185 = scalar_lea.vmem %s1, %s184
      %p186 = scmp.lt.s32.totalorder %s15, 1
      %s187 = scalar_select %p186, %s15, 1
      %s188 = smul.addr %s187, 8
      %s189 = scalar_lea.vmem %s2, %s188
      %p190 = scmp.lt.s32.totalorder %s15, 1
      %s191 = scalar_select %p190, %s15, 1
      %s192 = smul.addr %s191, 8
      %s193 = scalar_lea.vmem %s3, %s192
      %v194 = vld [vmem:[%s181] sm:$0xff]
      %v195 = vld [vmem:[%s185] sm:$0xff]
      %v196 = vsub.f32 %v195, %v194
      %v197 = vmul.f32 %v196, 0.5
      %v198 = vadd.f32 %v194, %v197
      %vm199 = vcmp.ge.f32.partialorder %v198, 1.0
      %v200 = vsel %vm199, 1, 0
      %v201 = vcvt.s32.f32 %v200
      %202 = vst [vmem:[%s193] sm:$0xff] %v201
      %v203 = vsel %vm199, 0.0, %v198
      %204 = vst [vmem:[%s189] sm:$0xff] %v203
      %p205 = scmp.lt.s32.totalorder %s15, 1
      %s206 = scalar_select %p205, %s15, 1
      %s207 = smul.addr %s206, 8
      %s208 = scalar_lea.vmem %s2, %s207
      %p209 = scmp.lt.s32.totalorder %s15, 1
      %s210 = scalar_select %p209, %s15, 1
      %s211 = smul.addr %s210, 8
      %s212 = scalar_lea.vmem %s3, %s211
      // Predicated region
      $region29: #{_lif_step_stateful.1} parent=27 // pred_check
        %p213 = pneg %p85
      $region30: #{_lif_step_stateful.1} parent=27 // pred_check_branch
        %215 = sbr.rel (%p213) target = $region32
      $region31: #{_lif_step_stateful.1} parent=27 // pred_region
        _
      $region32: #{_lif_step_stateful.1} parent=27 // pred_fallthru
        _
      // Predicated region
      $region33: #{_lif_step_stateful.1} parent=27 // pred_check
        %p216 = pneg %p111
      $region34: #{_lif_step_stateful.1} parent=27 // pred_check_branch
        %218 = sbr.rel (%p216) target = $region36
      $region35: #{_lif_step_stateful.1} parent=27 // pred_region
        _
      $region36: #{_lif_step_stateful.1} parent=27 // pred_fallthru
        _
    $region28: #{_lif_step_stateful.1} parent=5 // pred_fallthru
      _
    %p219 = scmp.le.s32.totalorder 2, %s10
    // Predicated region
    $region37: #{_lif_step_stateful.1} parent=5 // pred_check
      %p220 = pneg %p219
    $region38: #{_lif_step_stateful.1} parent=5 // pred_check_branch
      %222 = sbr.rel (%p220) target = $region40
    $region39: #{_lif_step_stateful.1} parent=5 // pred_region
      %s223 = ssub.s32 %s10, 2
      // Predicated region
      $region41: #{_lif_step_stateful.1} parent=39 // pred_check
        %p224 = pneg %p91
      $region42: #{_lif_step_stateful.1} parent=39 // pred_check_branch
        %226 = sbr.rel (%p224) target = $region44
      $region43: #{_lif_step_stateful.1} parent=39 // pred_region
        %p227 = scmp.lt.s32.totalorder %s16, 1
        %s228 = scalar_select %p227, %s16, 1
        %s229 = smul.addr %s228, 8
        %s230 = scalar_lea.vmem %s2, %s229
      $region44: #{_lif_step_stateful.1} parent=39 // pred_fallthru
        _
      // Predicated region
      $region45: #{_lif_step_stateful.1} parent=39 // pred_check
        %p231 = pneg %p117
      $region46: #{_lif_step_stateful.1} parent=39 // pred_check_branch
        %233 = sbr.rel (%p231) target = $region48
      $region47: #{_lif_step_stateful.1} parent=39 // pred_region
        %p234 = scmp.lt.s32.totalorder %s16, 1
        %s235 = scalar_select %p234, %s16, 1
        %s236 = smul.addr %s235, 8
        %s237 = scalar_lea.vmem %s3, %s236
      $region48: #{_lif_step_stateful.1} parent=39 // pred_fallthru
        _
    $region40: #{_lif_step_stateful.1} parent=5 // pred_fallthru
      _
  $region6: #{_lif_step_stateful.1} parent=0 // loop_footer
    %s14 = sadd.s32 1, %s10
  $region7: #{_lif_step_stateful.1} parent=0 // loop_footer_branch
    %9 = sbr.rel target = $region3
  $region8: #{_lif_step_stateful.1} parent=0 // loop_exit
    _

</llo_original>
